<compile_context>
chip_gen: v6e
topology: v6e:2x2x1
jax: 0.10.0
libtpu: 0.0.40
codegen_flags: <defaults>
</compile_context>

<pallas_src>
import jax
import jax.numpy as jnp
from jax.experimental import pallas as pl
from jax.experimental.pallas import tpu as pltpu


def actor_kernel(act_limit_ref, x_ref, w1_ref, b1_ref, w2_ref, b2_ref,
                 w3_ref, b3_ref, o_ref):
    """One batch tile: 3 bf16 MXU matmuls (f32 accumulation) + ReLU + tanh."""
    # In-kernel f32 -> bf16 cast: hides under the obs DMA, avoids a separate
    # wrapper-side XLA cast/pad pass over obs.
    x = x_ref[...].astype(jnp.bfloat16)                      # (tb, obs_dim)

    h1 = jnp.dot(x, w1_ref[...], preferred_element_type=jnp.float32)
    h1 = jnp.maximum(h1 + b1_ref[...], 0.0)                  # f32 bias + ReLU (VPU)

    h2 = jnp.dot(h1.astype(jnp.bfloat16), w2_ref[...],
                 preferred_element_type=jnp.float32)
    h2 = jnp.maximum(h2 + b2_ref[...], 0.0)

    y = jnp.dot(h2.astype(jnp.bfloat16), w3_ref[...],
                preferred_element_type=jnp.float32) + b3_ref[...]
    y = jnp.tanh(y)                                          # f32 tanh (EUP)

    o_ref[...] = (act_limit_ref[0] * y).astype(o_ref.dtype)  # (tb, act_dim) store


def _round_up(x, m):
    return ((x + m - 1) // m) * m


def prepare_actor_params(params):
    """One-time weight prep, hoisted out of the per-call hot path:
    bf16 matmul weights (MXU-native) and f32 row-vector biases."""
    (w1, b1), (w2, b2), (w3, b3) = params
    bf = jnp.bfloat16
    return (jnp.asarray(w1, bf), jnp.asarray(b1, jnp.float32).reshape(1, -1),
            jnp.asarray(w2, bf), jnp.asarray(b2, jnp.float32).reshape(1, -1),
            jnp.asarray(w3, bf), jnp.asarray(b3, jnp.float32).reshape(1, -1))


def _pick_batch_tile(batch, block_batch):
    """Batch tile: multiple of 8 (f32 sublane), <= batch, and yielding >= 2 grid
    steps once batch >= 32 so v7x megacore can split the batch across its two
    TensorCores (no-op on single-core v5e/v6e)."""
    if batch <= 8:
        return batch                                   # single full-dim block
    target = -(-batch // 2) if batch >= 32 else batch  # ceil(batch/2) for megacore
    target = min(target, max(8, block_batch))
    return min(_round_up(target, 8), (batch // 8) * 8)


def mlp_actor_forward(obs, prepared_params, act_limit, *, block_batch=2048):
    """MLPActor.forward. All layout glue stays out of the hot path; the kernel
    reads raw f32 obs and writes the exact (batch, act_dim) f32 result."""
    obs = jnp.asarray(obs, jnp.float32)
    squeeze = obs.ndim == 1
    if squeeze:
        obs = obs[None, :]                             # torch unsqueeze(0)
    w1b, b1f, w2b, b2f, w3b, b3f = prepared_params
    batch, obs_dim = obs.shape
    act_dim = w3b.shape[1]

    tb = _pick_batch_tile(batch, block_batch)
    num_tiles = pl.cdiv(batch, tb)                     # ragged tail handled by Pallas
    act_limit_arr = jnp.asarray(act_limit, jnp.float32).reshape((1,))

    def const_spec(shape):
        # Constant block index -> array stays VMEM-resident across grid steps.
        return pl.BlockSpec(shape, lambda i: (0,) * len(shape))

    out = pl.pallas_call(
        actor_kernel,
        out_shape=jax.ShapeDtypeStruct((batch, act_dim), jnp.float32),
        grid=(num_tiles,),
        in_specs=[
            pl.BlockSpec(memory_space=pltpu.MemorySpace.SMEM),   # act_limit scalar
            pl.BlockSpec((tb, obs_dim), lambda i: (i, 0)),       # obs batch tile
            const_spec(w1b.shape), const_spec(b1f.shape),        # resident weights
            const_spec(w2b.shape), const_spec(b2f.shape),
            const_spec(w3b.shape), const_spec(b3f.shape),
        ],
        out_specs=pl.BlockSpec((tb, act_dim), lambda i: (i, 0)),
        compiler_params=pltpu.CompilerParams(
            dimension_semantics=("parallel",)),                  # megacore on v7x
    )(act_limit_arr, obs, w1b, b1f, w2b, b2f, w3b, b3f)

    if squeeze:
        out = out[0]                                   # match torch: (act_dim,)
    return out


def init_mlp_params(key, sizes):
    """Deterministic init mimicking nn.Linear default: U(-1/sqrt(fan_in), +)."""
    params = []
    for j in range(len(sizes) - 1):
        key, kw, kb = jax.random.split(key, 3)
        fan_in, fan_out = sizes[j], sizes[j + 1]
        bound = 1.0 / (fan_in ** 0.5)
        w = jax.random.uniform(kw, (fan_in, fan_out), jnp.float32, -bound, bound)
        b = jax.random.uniform(kb, (1, fan_out), jnp.float32, -bound, bound)
        params.append((w, b))
    return params, key


if __name__ == "__main__":
    obs_dim, act_dim = 16, 8
    hidden_sizes = (32, 32)
    act_limit = 2.0

    key = jax.random.PRNGKey(0)
    sizes = [obs_dim] + list(hidden_sizes) + [act_dim]
    params, key = init_mlp_params(key, sizes)
    prepared = prepare_actor_params(params)             # one-time weight prep

    def ref_f32(o):
        (w1, b1), (w2, b2), (w3, b3) = params
        h1 = jnp.maximum(o @ w1 + b1, 0.0)
        h2 = jnp.maximum(h1 @ w2 + b2, 0.0)
        return act_limit * jnp.tanh(h2 @ w3 + b3)

    def ref_bf16(o):
        # Same cast points as the kernel (bf16 MXU operands, f32 accumulation).
        bf = jnp.bfloat16
        (w1, b1), (w2, b2), (w3, b3) = params
        h1 = jnp.maximum(jnp.dot(o.astype(bf), w1.astype(bf),
                                 preferred_element_type=jnp.float32) + b1, 0.0)
        h2 = jnp.maximum(jnp.dot(h1.astype(bf), w2.astype(bf),
                                 preferred_element_type=jnp.float32) + b2, 0.0)
        y = jnp.dot(h2.astype(bf), w3.astype(bf),
                    preferred_element_type=jnp.float32) + b3
        return act_limit * jnp.tanh(y)

    # 1) small batch (single grid step, un-padded lane-narrow output)
    key, kx = jax.random.split(key)
    obs = jax.random.normal(kx, (8, obs_dim), jnp.float32)
    out = mlp_actor_forward(obs, prepared, act_limit)
    jax.block_until_ready(out)
    assert out.shape == (8, act_dim)
    assert jnp.allclose(out, ref_bf16(obs), atol=1e-3), \
        float(jnp.max(jnp.abs(out - ref_bf16(obs))))
    assert jnp.allclose(out, ref_f32(obs), atol=1e-1), \
        float(jnp.max(jnp.abs(out - ref_f32(obs))))

    # 2) larger ragged batch -> multi-tile grid, resident weights, ragged tail
    #    absorbed by Pallas block padding (no wrapper jnp.pad / slice passes)
    key, kx = jax.random.split(key)
    obs2 = jax.random.normal(kx, (200, obs_dim), jnp.float32)
    out2 = mlp_actor_forward(obs2, prepared, act_limit, block_batch=64)
    jax.block_until_ready(out2)
    assert out2.shape == (200, act_dim)
    assert jnp.allclose(out2, ref_bf16(obs2), atol=1e-3), \
        float(jnp.max(jnp.abs(out2 - ref_bf16(obs2))))
    assert jnp.allclose(out2, ref_f32(obs2), atol=1e-1), \
        float(jnp.max(jnp.abs(out2 - ref_f32(obs2))))

    # 3) default tile picker (>= 2 grid steps once batch >= 32, for v7x megacore)
    out2b = mlp_actor_forward(obs2, prepared, act_limit)
    jax.block_until_ready(out2b)
    assert out2b.shape == (200, act_dim)
    assert jnp.allclose(out2b, ref_bf16(obs2), atol=1e-3)

    # 4) 1-D obs path: returns (act_dim,) exactly like the PyTorch module
    key, kx = jax.random.split(key)
    obs1 = jax.random.normal(kx, (obs_dim,), jnp.float32)
    out1 = mlp_actor_forward(obs1, prepared, act_limit)
    jax.block_until_ready(out1)
    assert out1.shape == (act_dim,)
    assert jnp.allclose(out1, ref_bf16(obs1[None, :])[0], atol=1e-3)

    # TODO(synk): the use_split=True (split_model / mlp_switch) branch is not used
    # by the default MLPActor constructor and is not implemented here.
    print("KERNEL_OK")
</pallas_src>

<mosaic_0001>
module attributes {stable_mosaic.version = 11 : i64} {
  func.func @actor_kernel(%arg0: i32, %arg1: memref<1xf32, #tpu.memory_space<smem>>, %arg2: memref<8x16xf32, #tpu.memory_space<vmem>>, %arg3: memref<16x32xbf16, #tpu.memory_space<vmem>>, %arg4: memref<1x32xf32, #tpu.memory_space<vmem>>, %arg5: memref<32x32xbf16, #tpu.memory_space<vmem>>, %arg6: memref<1x32xf32, #tpu.memory_space<vmem>>, %arg7: memref<32x8xbf16, #tpu.memory_space<vmem>>, %arg8: memref<1x8xf32, #tpu.memory_space<vmem>>, %arg9: memref<8x8xf32, #tpu.memory_space<vmem>>) attributes {dimension_semantics = [#tpu.dimension_semantics<parallel>], iteration_bounds = array<i64: 1>, scalar_prefetch = 0 : i64, scratch_operands = 0 : i64, tpu.core_type = #tpu.core_type<tc>, window_params = [{transform_indices = @transform_0, window_bounds = array<i64: 1>}, {transform_indices = @transform_1, window_bounds = array<i64: 8, 16>}, {pipeline_mode = #tpu.pipeline_mode<synchronous>, transform_indices = @transform_2, window_bounds = array<i64: 16, 32>}, {pipeline_mode = #tpu.pipeline_mode<synchronous>, transform_indices = @transform_3, window_bounds = array<i64: 1, 32>}, {pipeline_mode = #tpu.pipeline_mode<synchronous>, transform_indices = @transform_4, window_bounds = array<i64: 32, 32>}, {pipeline_mode = #tpu.pipeline_mode<synchronous>, transform_indices = @transform_5, window_bounds = array<i64: 1, 32>}, {pipeline_mode = #tpu.pipeline_mode<synchronous>, transform_indices = @transform_6, window_bounds = array<i64: 32, 8>}, {pipeline_mode = #tpu.pipeline_mode<synchronous>, transform_indices = @transform_7, window_bounds = array<i64: 1, 8>}, {transform_indices = @transform_8, window_bounds = array<i64: 8, 8>}]} {
    %c0 = arith.constant 0 : index
    %c0_0 = arith.constant 0 : index
    %0 = vector.load %arg2[%c0, %c0_0] : memref<8x16xf32, #tpu.memory_space<vmem>>, vector<8x16xf32>
    %1 = arith.truncf %0 : vector<8x16xf32> to vector<8x16xbf16>
    %c0_1 = arith.constant 0 : index
    %c0_2 = arith.constant 0 : index
    %2 = vector.load %arg3[%c0_1, %c0_2] : memref<16x32xbf16, #tpu.memory_space<vmem>>, vector<16x32xbf16>
    %cst = arith.constant dense<0.000000e+00> : vector<8x32xf32>
    %3 = tpu.matmul %1, %2, %cst {dimension_numbers = #tpu.dot_dimension_numbers<[1], [0], [0], [1], [0, 0, 1, 1], [], []>} : vector<8x16xbf16>, vector<16x32xbf16>, vector<8x32xf32> -> vector<8x32xf32>
    %c0_3 = arith.constant 0 : index
    %c0_4 = arith.constant 0 : index
    %4 = vector.load %arg4[%c0_3, %c0_4] : memref<1x32xf32, #tpu.memory_space<vmem>>, vector<1x32xf32>
    %5 = vector.broadcast %4 : vector<1x32xf32> to vector<8x32xf32>
    %6 = arith.addf %3, %5 : vector<8x32xf32>
    %cst_5 = arith.constant 0.000000e+00 : f32
    %7 = vector.broadcast %cst_5 : f32 to vector<8x32xf32>
    %8 = arith.maximumf %6, %7 : vector<8x32xf32>
    %9 = arith.truncf %8 : vector<8x32xf32> to vector<8x32xbf16>
    %c0_6 = arith.constant 0 : index
    %c0_7 = arith.constant 0 : index
    %10 = vector.load %arg5[%c0_6, %c0_7] : memref<32x32xbf16, #tpu.memory_space<vmem>>, vector<32x32xbf16>
    %cst_8 = arith.constant dense<0.000000e+00> : vector<8x32xf32>
    %11 = tpu.matmul %9, %10, %cst_8 {dimension_numbers = #tpu.dot_dimension_numbers<[1], [0], [0], [1], [0, 0, 1, 1], [], []>} : vector<8x32xbf16>, vector<32x32xbf16>, vector<8x32xf32> -> vector<8x32xf32>
    %c0_9 = arith.constant 0 : index
    %c0_10 = arith.constant 0 : index
    %12 = vector.load %arg6[%c0_9, %c0_10] : memref<1x32xf32, #tpu.memory_space<vmem>>, vector<1x32xf32>
    %13 = vector.broadcast %12 : vector<1x32xf32> to vector<8x32xf32>
    %14 = arith.addf %11, %13 : vector<8x32xf32>
    %cst_11 = arith.constant 0.000000e+00 : f32
    %15 = vector.broadcast %cst_11 : f32 to vector<8x32xf32>
    %16 = arith.maximumf %14, %15 : vector<8x32xf32>
    %17 = arith.truncf %16 : vector<8x32xf32> to vector<8x32xbf16>
    %c0_12 = arith.constant 0 : index
    %c0_13 = arith.constant 0 : index
    %18 = vector.load %arg7[%c0_12, %c0_13] : memref<32x8xbf16, #tpu.memory_space<vmem>>, vector<32x8xbf16>
    %cst_14 = arith.constant dense<0.000000e+00> : vector<8x8xf32>
    %19 = tpu.matmul %17, %18, %cst_14 {dimension_numbers = #tpu.dot_dimension_numbers<[1], [0], [0], [1], [0, 0, 1, 1], [], []>} : vector<8x32xbf16>, vector<32x8xbf16>, vector<8x8xf32> -> vector<8x8xf32>
    %c0_15 = arith.constant 0 : index
    %c0_16 = arith.constant 0 : index
    %20 = vector.load %arg8[%c0_15, %c0_16] : memref<1x8xf32, #tpu.memory_space<vmem>>, vector<1x8xf32>
    %21 = vector.broadcast %20 : vector<1x8xf32> to vector<8x8xf32>
    %22 = arith.addf %19, %21 : vector<8x8xf32>
    %23 = math.tanh %22 : vector<8x8xf32>
    %c0_17 = arith.constant 0 : index
    %24 = memref.load %arg1[%c0_17] : memref<1xf32, #tpu.memory_space<smem>>
    %25 = vector.broadcast %24 : f32 to vector<8x8xf32>
    %26 = arith.mulf %25, %23 : vector<8x8xf32>
    %c0_18 = arith.constant 0 : index
    %c0_19 = arith.constant 0 : index
    %27 = vector.load %arg9[%c0_18, %c0_19] : memref<8x8xf32, #tpu.memory_space<vmem>>, vector<8x8xf32>
    tpu.vector_store %arg9[%c0_18, %c0_19], %26 {strides = array<i32>} : memref<8x8xf32, #tpu.memory_space<vmem>>, vector<8x8xf32>,
    return
  }
  func.func @transform_0(%arg0: i32) -> i32 {
    %c0_i32 = arith.constant 0 : i32
    %c0_i32_0 = arith.constant 0 : i32
    return %c0_i32 : i32
  }
  func.func @transform_1(%arg0: i32) -> (i32, i32) {
    %c0_i32 = arith.constant 0 : i32
    %c0_i32_0 = arith.constant 0 : i32
    return %arg0, %c0_i32 : i32, i32
  }
  func.func @transform_2(%arg0: i32) -> (i32, i32) {
    %c0_i32 = arith.constant 0 : i32
    %c0_i32_0 = arith.constant 0 : i32
    %c0_i32_1 = arith.constant 0 : i32
    return %c0_i32, %c0_i32_0 : i32, i32
  }
  func.func @transform_3(%arg0: i32) -> (i32, i32) {
    %c0_i32 = arith.constant 0 : i32
    %c0_i32_0 = arith.constant 0 : i32
    %c0_i32_1 = arith.constant 0 : i32
    return %c0_i32, %c0_i32_0 : i32, i32
  }
  func.func @transform_4(%arg0: i32) -> (i32, i32) {
    %c0_i32 = arith.constant 0 : i32
    %c0_i32_0 = arith.constant 0 : i32
    %c0_i32_1 = arith.constant 0 : i32
    return %c0_i32, %c0_i32_0 : i32, i32
  }
  func.func @transform_5(%arg0: i32) -> (i32, i32) {
    %c0_i32 = arith.constant 0 : i32
    %c0_i32_0 = arith.constant 0 : i32
    %c0_i32_1 = arith.constant 0 : i32
    return %c0_i32, %c0_i32_0 : i32, i32
  }
  func.func @transform_6(%arg0: i32) -> (i32, i32) {
    %c0_i32 = arith.constant 0 : i32
    %c0_i32_0 = arith.constant 0 : i32
    %c0_i32_1 = arith.constant 0 : i32
    return %c0_i32, %c0_i32_0 : i32, i32
  }
  func.func @transform_7(%arg0: i32) -> (i32, i32) {
    %c0_i32 = arith.constant 0 : i32
    %c0_i32_0 = arith.constant 0 : i32
    %c0_i32_1 = arith.constant 0 : i32
    return %c0_i32, %c0_i32_0 : i32, i32
  }
  func.func @transform_8(%arg0: i32) -> (i32, i32) {
    %c0_i32 = arith.constant 0 : i32
    %c0_i32_0 = arith.constant 0 : i32
    return %arg0, %c0_i32 : i32, i32
  }
}

</mosaic_0001>

<llo_original>
// kernel: tpu_custom_call.1
$region0: #{tpu_custom_call.1}
  #allocation0 [shape = 'u32[]', space=smem, size = 0x4, offset = 0x4, fixed_abs, tag = 'smem constant byte address 0x4 - core index']
  #allocation1 [shape = 'u32[144,128]{1,0:T(1,128)}', space=vmem, size = 0x12000, scoped, tag = 'internal scratch']
  #allocation2 [shape = 'f32[1]{0:T(128)S(6)}', space=smem, size = 0x200, scoped, tag = 'scoped memory for tpu_custom_call.1']
  %s0 = inlined_call_operand.<no memory space> [shape: f32[1], index: 0, kind: input, shape index: {}]
  %s1 = inlined_call_operand.vmem [shape: f32[8,16], index: 1, kind: input, shape index: {}]
  %s2 = inlined_call_operand.hbm [shape: bf16[16,32], index: 2, kind: input, shape index: {}]
  %s3 = inlined_call_operand.vmem [shape: f32[1,32], index: 3, kind: input, shape index: {}]
  %s4 = inlined_call_operand.vmem [shape: bf16[32,32], index: 4, kind: input, shape index: {}]
  %s5 = inlined_call_operand.hbm [shape: f32[1,32], index: 5, kind: input, shape index: {}]
  %s6 = inlined_call_operand.vmem [shape: bf16[32,8], index: 6, kind: input, shape index: {}]
  %s7 = inlined_call_operand.vmem [shape: f32[1,8], index: 7, kind: input, shape index: {}]
  %s8 = inlined_call_operand.hbm [shape: f32[8,8], index: 8, kind: output, shape index: {}]
  %s9 = sld [smem:[#allocation0]]
  $region50: #{tpu_custom_call.1} parent=0
    _
  %s11 = ssub.s32 1, %s9
  %s12 = scalar_select 0, %s11, %s9
  %13 = sst [smem:[#allocation2]] %s0
  $region1: #{tpu_custom_call.1} parent=0
    #allocation3 [shape = 'u8[4096]{0}', space=vmem, size = 0x1000, scoped, tag = 'input window, operand 2, single buffered']
    #allocation4 [shape = 's32[1]{0}', space=sflag, size = 0x4, scoped, tag = 'scoped memory for tpu_custom_call.1']
    #allocation5 [shape = 's32[1]{0}', space=sflag, size = 0x4, scoped, tag = 'scoped memory for tpu_custom_call.1']
    #allocation6 [shape = 'u8[512]{0}', space=vmem, size = 0x400, scoped, tag = 'input window, operand 5, single buffered']
    #allocation7 [shape = 's32[1]{0}', space=sflag, size = 0x4, scoped, tag = 'scoped memory for tpu_custom_call.1']
    #allocation8 [shape = 'u8[4096]{0}', space=vmem, size = 0x1000, scoped, tag = 'output window, operand 0, single buffered']
    %14 = vsyncpa [#allocation4], 0
    %15 = vsyncpa [#allocation7], 0
    %16 = vsyncpa [#allocation5], 0
    // Predicated region
    $region2: #{tpu_custom_call.1} parent=1 // pred_check
      _
    $region3: #{tpu_custom_call.1} parent=1 // pred_check_branch
      %18 = sbr.rel (0) target = $region5
    $region4: #{tpu_custom_call.1} parent=1 // pred_region
      _
    $region5: #{tpu_custom_call.1} parent=1 // pred_fallthru
      _
    // Predicated region
    $region6: #{tpu_custom_call.1} parent=1 // pred_check
      _
    $region7: #{tpu_custom_call.1} parent=1 // pred_check_branch
      %20 = sbr.rel (0) target = $region9
    $region8: #{tpu_custom_call.1} parent=1 // pred_region
      _
    $region9: #{tpu_custom_call.1} parent=1 // pred_fallthru
      _
    // Predicated region
    $region10: #{tpu_custom_call.1} parent=1 // pred_check
      _
    $region11: #{tpu_custom_call.1} parent=1 // pred_check_branch
      %22 = sbr.rel (0) target = $region13
    $region12: #{tpu_custom_call.1} parent=1 // pred_region
      %s24 = ssub.s32 128, 128
      %25 = vsyncadd [#allocation4], %s24
      %s26 = sshll.u32 [#allocation3], 4
      %s27 = int_to_ptr.vmem [resolvable:$true] %s26
      %32 = dma.hbm_to_vmem [thread:$0]  %s2, 128, %s27, [#allocation4], 64, 64, 4
    $region13: #{tpu_custom_call.1} parent=1 // pred_fallthru
      _
    // Predicated region
    $region14: #{tpu_custom_call.1} parent=1 // pred_check
      _
    $region15: #{tpu_custom_call.1} parent=1 // pred_check_branch
      %34 = sbr.rel (0) target = $region17
    $region16: #{tpu_custom_call.1} parent=1 // pred_region
      _
    $region17: #{tpu_custom_call.1} parent=1 // pred_fallthru
      _
    // Predicated region
    $region18: #{tpu_custom_call.1} parent=1 // pred_check
      _
    $region19: #{tpu_custom_call.1} parent=1 // pred_check_branch
      %36 = sbr.rel (0) target = $region21
    $region20: #{tpu_custom_call.1} parent=1 // pred_region
      _
    $region21: #{tpu_custom_call.1} parent=1 // pred_fallthru
      _
    // Predicated region
    $region22: #{tpu_custom_call.1} parent=1 // pred_check
      _
    $region23: #{tpu_custom_call.1} parent=1 // pred_check_branch
      %38 = sbr.rel (0) target = $region25
    $region24: #{tpu_custom_call.1} parent=1 // pred_region
      %s40 = ssub.s32 16, 16
      %41 = vsyncadd [#allocation7], %s40
      %s43 = sshll.u32 [#allocation6], 4
      %s44 = int_to_ptr.vmem [resolvable:$true] %s43
      %46 = dma.hbm_to_vmem [thread:$0]  %s5, 16, %s44, [#allocation7]
    $region25: #{tpu_custom_call.1} parent=1 // pred_fallthru
      _
    // Predicated region
    $region26: #{tpu_custom_call.1} parent=1 // pred_check
      _
    $region27: #{tpu_custom_call.1} parent=1 // pred_check_branch
      %48 = sbr.rel (0) target = $region29
    $region28: #{tpu_custom_call.1} parent=1 // pred_region
      _
    $region29: #{tpu_custom_call.1} parent=1 // pred_fallthru
      _
    // Predicated region
    $region30: #{tpu_custom_call.1} parent=1 // pred_check
      _
    $region31: #{tpu_custom_call.1} parent=1 // pred_check_branch
      %50 = sbr.rel (0) target = $region33
    $region32: #{tpu_custom_call.1} parent=1 // pred_region
      _
    $region33: #{tpu_custom_call.1} parent=1 // pred_fallthru
      _
    // Predicated region
    $region34: #{tpu_custom_call.1} parent=1 // pred_check
      _
    $region35: #{tpu_custom_call.1} parent=1 // pred_check_branch
      %52 = sbr.rel (0) target = $region37
    $region36: #{tpu_custom_call.1} parent=1 // pred_region
      %53 = dma.done [#allocation4], 128
    $region37: #{tpu_custom_call.1} parent=1 // pred_fallthru
      _
    // Predicated region
    $region38: #{tpu_custom_call.1} parent=1 // pred_check
      _
    $region39: #{tpu_custom_call.1} parent=1 // pred_check_branch
      %55 = sbr.rel (0) target = $region41
    $region40: #{tpu_custom_call.1} parent=1 // pred_region
      %56 = dma.done [#allocation7], 16
    $region41: #{tpu_custom_call.1} parent=1 // pred_fallthru
      _
    %v58 = vld [vmem:[%s1] sm:$0xff]
    %v59 = vpack.c.bf16 %v58, %v58
    %v60 = vld [vmem:[#allocation3] sm:$0xf]
    %v61 = vld [vmem:[#allocation3 + $0x4] sm:$0xf]
    %v62 = vld [vmem:[%s3] sm:$0x1]
    %v64 = vlaneseq
    %v65 = vshrl.u32 %v64, 7
    %v66 = vsub.s32 0, %v65
    %v67 = vrot.slane %v62, %v66
    %v71 = vunpack.c.l.b16 %v60
    %v72 = vunpack.c.l.b16 %v61
    %v73 = vpack.c.b16 %v72, %v71
    %vm75 = vcmask 130048
    %v77 = vsel %vm75, %v59, 0
    %79 = vmatprep.subr.bf16.mxu0 0
    %80 = vmatpush1.bf16.msra.mxu0 0
    %81 = vmatprep.subr.bf16.mxu0 0
    %82 = vmatpush1.bf16.msra.mxu0 0
    %83 = vmatprep.subr.bf16.mxu0 0
    %84 = vmatpush1.bf16.msra.mxu0 0
    %85 = vmatprep.subr.bf16.mxu0 0
    %86 = vmatpush1.bf16.msra.mxu0 0
    %87 = vmatprep.subr.bf16.mxu0 0
    %88 = vmatpush1.bf16.msra.mxu0 0
    %89 = vmatprep.subr.bf16.mxu0 0
    %90 = vmatpush1.bf16.msra.mxu0 0
    %91 = vmatprep.subr.bf16.mxu0 0
    %92 = vmatpush1.bf16.msra.mxu0 0
    %93 = vmatprep.subr.bf16.mxu0 0
    %94 = vmatpush1.bf16.msra.mxu0 %v73
    %95 = vmatprep.subr.bf16.mxu0 0
    %96 = vmatpush2.bf16.msra.mxu0 0
    %97 = vmatprep.subr.bf16.mxu0 0
    %98 = vmatpush2.bf16.msra.mxu0 0
    %99 = vmatprep.subr.bf16.mxu0 0
    %100 = vmatpush2.bf16.msra.mxu0 0
    %101 = vmatprep.subr.bf16.mxu0 0
    %102 = vmatpush2.bf16.msra.mxu0 0
    %103 = vmatprep.subr.bf16.mxu0 0
    %104 = vmatpush2.bf16.msra.mxu0 0
    %105 = vmatprep.subr.bf16.mxu0 0
    %106 = vmatpush2.bf16.msra.mxu0 0
    %107 = vmatprep.subr.bf16.mxu0 0
    %108 = vmatpush2.bf16.msra.mxu0 0
    %109 = vmatprep.subr.bf16.mxu0 0
    %110 = vmatpush2.bf16.msra.mxu0 0
    %111 = vmatprep.mubr.bf16.mxu0 0
    %112 = vmatmul.mubr.bf16.gmra.mxu0 %v77
    %v113 = vpop.f32.mrf.mxu0
    %v114 = vadd.f32 %v67, %v113
    %v115 = vpop.f32.mrf.mxu0
    %v116 = vpop.f32.mrf.mxu0
    %v117 = vpop.f32.mrf.mxu0
    %118 = vdwg.mxu0
    %v119 = vmax.f32 %v114, 0.0
    %v120 = vpack.c.bf16 %v119, %v119
    %v121 = vld [vmem:[%s4] sm:$0xf]
    %v122 = vld [vmem:[%s4 + $0x4] sm:$0xf]
    %v123 = vld [vmem:[%s4 + $0x8] sm:$0xf]
    %v124 = vld [vmem:[%s4 + $0xc] sm:$0xf]
    %v125 = vld [vmem:[#allocation6] sm:$0x1]
    %v127 = vlaneseq
    %v128 = vshrl.u32 %v127, 7
    %v129 = vsub.s32 0, %v128
    %v130 = vrot.slane %v125, %v129
    %v136 = vunpack.c.l.b16 %v121
    %v137 = vunpack.c.l.b16 %v122
    %v138 = vunpack.c.l.b16 %v123
    %v139 = vunpack.c.l.b16 %v124
    %v140 = vpack.c.b16 %v137, %v136
    %v141 = vpack.c.b16 %v139, %v138
    %vm144 = vcmask 261120
    %v146 = vsel %vm144, %v120, 0
    %148 = vmatprep.subr.bf16.mxu0 0
    %149 = vmatpush1.bf16.msra.mxu0 0
    %150 = vmatprep.subr.bf16.mxu0 0
    %151 = vmatpush1.bf16.msra.mxu0 0
    %152 = vmatprep.subr.bf16.mxu0 0
    %153 = vmatpush1.bf16.msra.mxu0 0
    %154 = vmatprep.subr.bf16.mxu0 0
    %155 = vmatpush1.bf16.msra.mxu0 0
    %156 = vmatprep.subr.bf16.mxu0 0
    %157 = vmatpush1.bf16.msra.mxu0 0
    %158 = vmatprep.subr.bf16.mxu0 0
    %159 = vmatpush1.bf16.msra.mxu0 0
    %160 = vmatprep.subr.bf16.mxu0 0
    %161 = vmatpush1.bf16.msra.mxu0 %v141
    %162 = vmatprep.subr.bf16.mxu0 0
    %163 = vmatpush1.bf16.msra.mxu0 %v140
    %164 = vmatprep.subr.bf16.mxu0 0
    %165 = vmatpush2.bf16.msra.mxu0 0
    %166 = vmatprep.subr.bf16.mxu0 0
    %167 = vmatpush2.bf16.msra.mxu0 0
    %168 = vmatprep.subr.bf16.mxu0 0
    %169 = vmatpush2.bf16.msra.mxu0 0
    %170 = vmatprep.subr.bf16.mxu0 0
    %171 = vmatpush2.bf16.msra.mxu0 0
    %172 = vmatprep.subr.bf16.mxu0 0
    %173 = vmatpush2.bf16.msra.mxu0 0
    %174 = vmatprep.subr.bf16.mxu0 0
    %175 = vmatpush2.bf16.msra.mxu0 0
    %176 = vmatprep.subr.bf16.mxu0 0
    %177 = vmatpush2.bf16.msra.mxu0 0
    %178 = vmatprep.subr.bf16.mxu0 0
    %179 = vmatpush2.bf16.msra.mxu0 0
    %180 = vmatprep.mubr.bf16.mxu0 0
    %181 = vmatmul.mubr.bf16.gmra.mxu0 %v146
    %v182 = vpop.f32.mrf.mxu0
    %v183 = vadd.f32 %v130, %v182
    %v184 = vpop.f32.mrf.mxu0
    %v185 = vpop.f32.mrf.mxu0
    %v186 = vpop.f32.mrf.mxu0
    %187 = vdwg.mxu0
    %v188 = vmax.f32 %v183, 0.0
    %v189 = vpack.c.bf16 %v188, %v188
    %v190 = vld [vmem:[%s6] sm:$0xf]
    %v191 = vld [vmem:[%s6 + $0x4] sm:$0xf]
    %v192 = vld [vmem:[%s6 + $0x8] sm:$0xf]
    %v193 = vld [vmem:[%s6 + $0xc] sm:$0xf]
    %v194 = vld [vmem:[%s7] sm:$0x1]
    %v196 = vlaneseq
    %v197 = vshrl.u32 %v196, 7
    %v198 = vsub.s32 0, %v197
    %v199 = vrot.slane %v194, %v198
    %v205 = vunpack.c.l.b16 %v190
    %v206 = vunpack.c.l.b16 %v191
    %v207 = vunpack.c.l.b16 %v192
    %v208 = vunpack.c.l.b16 %v193
    %v209 = vpack.c.b16 %v206, %v205
    %v210 = vpack.c.b16 %v208, %v207
    %v214 = vsel %vm144, %v189, 0
    %216 = vmatprep.subr.bf16.mxu0 0
    %217 = vmatpush1.bf16.msra.mxu0 0
    %218 = vmatprep.subr.bf16.mxu0 0
    %219 = vmatpush1.bf16.msra.mxu0 0
    %220 = vmatprep.subr.bf16.mxu0 0
    %221 = vmatpush1.bf16.msra.mxu0 0
    %222 = vmatprep.subr.bf16.mxu0 0
    %223 = vmatpush1.bf16.msra.mxu0 0
    %224 = vmatprep.subr.bf16.mxu0 0
    %225 = vmatpush1.bf16.msra.mxu0 0
    %226 = vmatprep.subr.bf16.mxu0 0
    %227 = vmatpush1.bf16.msra.mxu0 0
    %228 = vmatprep.subr.bf16.mxu0 0
    %229 = vmatpush1.bf16.msra.mxu0 %v210
    %230 = vmatprep.subr.bf16.mxu0 0
    %231 = vmatpush1.bf16.msra.mxu0 %v209
    %232 = vmatprep.subr.bf16.mxu0 0
    %233 = vmatpush2.bf16.msra.mxu0 0
    %234 = vmatprep.subr.bf16.mxu0 0
    %235 = vmatpush2.bf16.msra.mxu0 0
    %236 = vmatprep.subr.bf16.mxu0 0
    %237 = vmatpush2.bf16.msra.mxu0 0
    %238 = vmatprep.subr.bf16.mxu0 0
    %239 = vmatpush2.bf16.msra.mxu0 0
    %240 = vmatprep.subr.bf16.mxu0 0
    %241 = vmatpush2.bf16.msra.mxu0 0
    %242 = vmatprep.subr.bf16.mxu0 0
    %243 = vmatpush2.bf16.msra.mxu0 0
    %244 = vmatprep.subr.bf16.mxu0 0
    %245 = vmatpush2.bf16.msra.mxu0 0
    %246 = vmatprep.subr.bf16.mxu0 0
    %247 = vmatpush2.bf16.msra.mxu0 0
    %248 = vmatprep.mubr.bf16.mxu0 0
    %249 = vmatmul.mubr.bf16.gmra.mxu0 %v214
    %v250 = vpop.f32.mrf.mxu0
    %v251 = vadd.f32 %v199, %v250
    %v252 = vpop.f32.mrf.mxu0
    %v253 = vpop.f32.mrf.mxu0
    %v254 = vpop.f32.mrf.mxu0
    %255 = vdwg.mxu0
    %v256 = vtanh.pop %v251
    %s257 = sld [smem:[#allocation2]]
    %v258 = vstv %s257
    %v259 = vmul.f32 %v258, %v256
    %vm260 = vcmask 64512
    %261 = vst.msk [vmem:[#allocation8] sm:$0xff] %vm260, %v259
    // Predicated region
    $region42: #{tpu_custom_call.1} parent=1 // pred_check
      _
    $region43: #{tpu_custom_call.1} parent=1 // pred_check_branch
      %263 = sbr.rel (0) target = $region45
    $region44: #{tpu_custom_call.1} parent=1 // pred_region
      %s265 = ssub.s32 128, 128
      %266 = vsyncadd [#allocation5], %s265
      %s268 = sshll.u32 [#allocation8], 4
      %s269 = int_to_ptr.vmem [resolvable:$true] %s268
      %271 = dma.vmem_to_hbm [thread:$0]  %s269, 128, %s8, [#allocation5]
    $region45: #{tpu_custom_call.1} parent=1 // pred_fallthru
      _
    // Predicated region
    $region46: #{tpu_custom_call.1} parent=1 // pred_check
      _
    $region47: #{tpu_custom_call.1} parent=1 // pred_check_branch
      %273 = sbr.rel (0) target = $region49
    $region48: #{tpu_custom_call.1} parent=1 // pred_region
      %274 = dma.done [#allocation5], 128
    $region49: #{tpu_custom_call.1} parent=1 // pred_fallthru
      _
    %275 = vsyncpa [#allocation4], 1
    %276 = vsyncpa [#allocation7], 1
    %277 = vsyncpa [#allocation5], 1

</llo_original>
